<compile_context>
chip_gen: v5e
topology: v5e:2x2
jax: 0.10.0
libtpu: 0.0.40
codegen_flags: <defaults>
</compile_context>

<pallas_src>
import math
from functools import partial

import jax
import jax.numpy as jnp
from jax.experimental import pallas as pl
from jax.experimental.pallas import tpu as pltpu

_HALO = 128  # one 128-lane tile of right halo (requires K <= 128)


def adaptive_conv1d_kernel(w_ref, xa_ref, xh_ref, o_ref, *, stride: int):
    # w_ref : SMEM (C_out, K)            per-output-channel 1-D kernels (scalars)
    # xa_ref: VMEM (1, C_in, Lb)         main input window, Lb = Lt * stride
    # xh_ref: VMEM (1, C_in, _HALO)      right halo (next 128 input columns)
    # o_ref : VMEM (1, C_out, Lt)        lane-dense output tile (NCL layout)
    C_out, K = w_ref.shape
    B_blk, _, Lt = o_ref.shape

    # Fused C_in reduction: same kernel applied to every input channel then
    # summed over channels  <=>  convolve the channel-sum.  f32 accumulation.
    xa = jnp.sum(xa_ref[...].astype(jnp.float32), axis=1)        # (1, Lb)
    xh = jnp.sum(xh_ref[...].astype(jnp.float32), axis=1)        # (1, _HALO)
    xs = jnp.concatenate([xa, xh], axis=-1)                      # (1, Lb + _HALO)

    # Shifted taps, computed once and reused across all output channels.
    taps = []
    for k in range(K):
        if stride == 1:
            taps.append(jax.lax.slice_in_dim(xs, k, k + Lt, axis=1))
        else:
            # TODO(synk): for stride > 1, decimate via strided DMA / strided ref
            # reads instead of an in-VMEM strided slice.
            taps.append(jax.lax.slice(
                xs, (0, k), (B_blk, k + stride * (Lt - 1) + 1), (1, stride)))

    # VPU broadcast-MAC with scalar weights from SMEM; one row per out channel.
    for c in range(C_out):
        acc = w_ref[c, 0] * taps[0]
        for k in range(1, K):
            acc = acc + w_ref[c, k] * taps[k]
        o_ref[:, c, :] = acc.astype(o_ref.dtype)


def adaptive_conv1d_forward(x, weights, *, stride: int = 1, padding=None,
                            lt_max: int = 1024):
    """x: (B, C_in, L) NCL like PyTorch.  weights: (C_out, K).  Returns (B, C_out, L_out)."""
    B, C_in, L = x.shape
    C_out, K = weights.shape
    if K > _HALO:
        raise NotImplementedError("kernel_size must be <= 128 (single halo tile)")

    if padding == 'same':
        if stride != 1:
            # torch.nn.functional.conv1d rejects padding='same' with stride != 1.
            raise ValueError("padding='same' requires stride == 1")
        total = K - 1
        left, right = total // 2, total - total // 2
    else:
        left = right = 0

    L_in = L + left + right
    if L_in < K:
        raise ValueError("input length too small for kernel_size")
    L_out = (L_in - K) // stride + 1

    # ---- tile selection: lane-dense 128-multiples, bounded VMEM footprint ----
    def _round_up(a, m):
        return ((a + m - 1) // m) * m

    itemsize = jnp.dtype(x.dtype).itemsize
    budget = 12 * 1024 * 1024  # double-buffered blocks; safe on v5e/v6e/v7x

    def _footprint(lt):
        lb = lt * stride
        per_buf = C_in * (lb + _HALO) * itemsize + C_out * lt * itemsize
        return 2 * per_buf  # x2: Pallas double-buffers each operand

    Lt = 128
    for cand in (2048, 1024, 512, 256, 128):
        if cand <= lt_max and _footprint(cand) <= budget:
            Lt = cand
            break
    Lt = min(Lt, _round_up(L_out, 128))
    # TODO(synk): for very large C_in, add a trailing 'arbitrary' grid axis over
    # C_in tiles with a VMEM accumulator instead of keeping all of C_in per block.

    n_L = -(-L_out // Lt)          # number of L_out tiles
    Lb = Lt * stride               # input advance per output tile
    L_need = n_L * Lb + _HALO      # padded input length the BlockSpecs address

    right_total = right + max(0, L_need - L_in)
    if left or right_total:
        x = jnp.pad(x, ((0, 0), (0, 0), (left, right_total)))

    lb_blocks = Lb // _HALO        # main-block advance measured in 128-lane blocks

    out = pl.pallas_call(
        partial(adaptive_conv1d_kernel, stride=stride),
        out_shape=jax.ShapeDtypeStruct((B, C_out, L_out), x.dtype),
        grid=(B, n_L),
        in_specs=[
            # small weight table -> SMEM, read as scalars inside the kernel
            pl.BlockSpec(memory_space=pltpu.MemorySpace.SMEM),
            # main input window for this output tile
            pl.BlockSpec((1, C_in, Lb), lambda b, l: (b, 0, l)),
            # 128-lane right halo (the K-1 extra columns the last taps need)
            pl.BlockSpec((1, C_in, _HALO), lambda b, l: (b, 0, (l + 1) * lb_blocks)),
        ],
        out_specs=pl.BlockSpec((1, C_out, Lt), lambda b, l: (b, 0, l)),
        compiler_params=pltpu.CompilerParams(
            dimension_semantics=("parallel", "parallel"),
            vmem_limit_bytes=32 * 1024 * 1024),
    )(weights, x, x)

    return out  # already NCL: (B, C_out, L_out)


def reference_forward(x, weights, *, stride: int = 1, padding=None):
    """Pure-JAX reference mirroring the PyTorch loop structure."""
    B, C_in, L = x.shape
    C_out, K = weights.shape
    if padding == 'same':
        total = K - 1
        lft = total // 2
        x = jnp.pad(x, ((0, 0), (0, 0), (lft, total - lft)))
        L = L + total
    L_out = (L - K) // stride + 1
    xs = jnp.sum(x, axis=1)                                   # (B, L)
    outs = []
    for c in range(C_out):
        acc = jnp.zeros((B, L_out), jnp.float32)
        for k in range(K):
            acc = acc + xs[:, k:k + stride * (L_out - 1) + 1:stride] * weights[c, k]
        outs.append(acc)
    return jnp.stack(outs, axis=1)                            # (B, C_out, L_out)


if __name__ == "__main__":
    key = jax.random.PRNGKey(0)
    kx, kw, kx2 = jax.random.split(key, 3)

    # Small shapes consistent with the module's forward (NCL input).
    B, C_in, L = 2, 4, 16
    out_channel, kernel_size = 8, 3

    x = jax.random.normal(kx, (B, C_in, L), dtype=jnp.float32)

    # kaiming_uniform_(a=sqrt(5)) on a (1, 1, K) tensor -> uniform(-1/sqrt(K), 1/sqrt(K))
    bound = 1.0 / math.sqrt(kernel_size)
    weights = jax.random.uniform(
        kw, (out_channel, kernel_size), minval=-bound, maxval=bound, dtype=jnp.float32)
    # NOTE: the PyTorch module allocates `_bias` but never uses it in forward(); omitted.

    # Case 1: 'valid' conv, stride 1.
    out = jax.block_until_ready(adaptive_conv1d_forward(x, weights, stride=1, padding=None))
    ref = reference_forward(x, weights, stride=1, padding=None)
    assert out.shape == ref.shape, (out.shape, ref.shape)
    assert jnp.allclose(out, ref, rtol=1e-5, atol=1e-5), "mismatch vs reference (valid)"

    # Case 2: 'same' padding, stride 1.
    out2 = jax.block_until_ready(adaptive_conv1d_forward(x, weights, stride=1, padding='same'))
    ref2 = reference_forward(x, weights, stride=1, padding='same')
    assert out2.shape == ref2.shape, (out2.shape, ref2.shape)
    assert jnp.allclose(out2, ref2, rtol=1e-5, atol=1e-5), "mismatch vs reference (same)"

    # Case 3: multi-tile L_out (exercises the halo BlockSpec across output tiles).
    x3 = jax.random.normal(kx2, (B, C_in, 300), dtype=jnp.float32)
    out3 = jax.block_until_ready(
        adaptive_conv1d_forward(x3, weights, stride=1, padding=None, lt_max=128))
    ref3 = reference_forward(x3, weights, stride=1, padding=None)
    assert out3.shape == ref3.shape, (out3.shape, ref3.shape)
    assert jnp.allclose(out3, ref3, rtol=1e-5, atol=1e-5), "mismatch vs reference (tiled)"

    print("KERNEL_OK")
</pallas_src>

<mosaic_0001>
module attributes {stable_mosaic.version = 11 : i64} {
  func.func @adaptive_conv1d_kernel(%arg0: i32, %arg1: i32, %arg2: memref<8x3xf32, #tpu.memory_space<smem>>, %arg3: memref<1x4x128xf32, #tpu.memory_space<vmem>>, %arg4: memref<1x4x128xf32, #tpu.memory_space<vmem>>, %arg5: memref<1x8x128xf32, #tpu.memory_space<vmem>>) attributes {dimension_semantics = [#tpu.dimension_semantics<parallel>, #tpu.dimension_semantics<parallel>], iteration_bounds = array<i64: 2, 1>, scalar_prefetch = 0 : i64, scratch_operands = 0 : i64, tpu.core_type = #tpu.core_type<tc>, window_params = [{transform_indices = @transform_0, window_bounds = array<i64: 8, 3>}, {transform_indices = @transform_1, window_bounds = array<i64: 1, 4, 128>}, {transform_indices = @transform_2, window_bounds = array<i64: 1, 4, 128>}, {transform_indices = @transform_3, window_bounds = array<i64: 1, 8, 128>}]} {
    %c0 = arith.constant 0 : index
    %c0_0 = arith.constant 0 : index
    %c0_1 = arith.constant 0 : index
    %0 = vector.load %arg3[%c0, %c0_0, %c0_1] : memref<1x4x128xf32, #tpu.memory_space<vmem>>, vector<1x4x128xf32>
    %cst = arith.constant dense<0.000000e+00> : vector<1x128xf32>
    %1 = vector.multi_reduction <add>, %0, %cst [1] : vector<1x4x128xf32> to vector<1x128xf32>
    %c0_2 = arith.constant 0 : index
    %c0_3 = arith.constant 0 : index
    %c0_4 = arith.constant 0 : index
    %2 = vector.load %arg4[%c0_2, %c0_3, %c0_4] : memref<1x4x128xf32, #tpu.memory_space<vmem>>, vector<1x4x128xf32>
    %cst_5 = arith.constant dense<0.000000e+00> : vector<1x128xf32>
    %3 = vector.multi_reduction <add>, %2, %cst_5 [1] : vector<1x4x128xf32> to vector<1x128xf32>
    %4 = tpu.concatenate %1, %3 in 1 : vector<1x128xf32>, vector<1x128xf32> -> vector<1x256xf32>
    %5 = vector.extract_strided_slice %4 {offsets = [0, 0], sizes = [1, 128], strides = [1, 1]} : vector<1x256xf32> to vector<1x128xf32>
    %6 = vector.extract_strided_slice %4 {offsets = [0, 1], sizes = [1, 128], strides = [1, 1]} : vector<1x256xf32> to vector<1x128xf32>
    %7 = vector.extract_strided_slice %4 {offsets = [0, 2], sizes = [1, 128], strides = [1, 1]} : vector<1x256xf32> to vector<1x128xf32>
    %c0_6 = arith.constant 0 : index
    %c0_7 = arith.constant 0 : index
    %8 = memref.load %arg2[%c0_6, %c0_7] : memref<8x3xf32, #tpu.memory_space<smem>>
    %9 = vector.broadcast %8 : f32 to vector<1x128xf32>
    %10 = arith.mulf %9, %5 : vector<1x128xf32>
    %c0_8 = arith.constant 0 : index
    %c1 = arith.constant 1 : index
    %11 = memref.load %arg2[%c0_8, %c1] : memref<8x3xf32, #tpu.memory_space<smem>>
    %12 = vector.broadcast %11 : f32 to vector<1x128xf32>
    %13 = arith.mulf %12, %6 : vector<1x128xf32>
    %14 = arith.addf %10, %13 : vector<1x128xf32>
    %c0_9 = arith.constant 0 : index
    %c2 = arith.constant 2 : index
    %15 = memref.load %arg2[%c0_9, %c2] : memref<8x3xf32, #tpu.memory_space<smem>>
    %16 = vector.broadcast %15 : f32 to vector<1x128xf32>
    %17 = arith.mulf %16, %7 : vector<1x128xf32>
    %18 = arith.addf %14, %17 : vector<1x128xf32>
    %c0_10 = arith.constant 0 : index
    %c0_11 = arith.constant 0 : index
    %c0_12 = arith.constant 0 : index
    %19 = vector.load %arg5[%c0_10, %c0_11, %c0_12] : memref<1x8x128xf32, #tpu.memory_space<vmem>>, vector<1x1x128xf32>
    %20 = vector.shape_cast %19 : vector<1x1x128xf32> to vector<1x128xf32>
    %21 = vector.shape_cast %18 : vector<1x128xf32> to vector<1x1x128xf32>
    tpu.vector_store %arg5[%c0_10, %c0_11, %c0_12], %21 {strides = array<i32>} : memref<1x8x128xf32, #tpu.memory_space<vmem>>, vector<1x1x128xf32>,
    %c1_13 = arith.constant 1 : index
    %c0_14 = arith.constant 0 : index
    %22 = memref.load %arg2[%c1_13, %c0_14] : memref<8x3xf32, #tpu.memory_space<smem>>
    %23 = vector.broadcast %22 : f32 to vector<1x128xf32>
    %24 = arith.mulf %23, %5 : vector<1x128xf32>
    %c1_15 = arith.constant 1 : index
    %c1_16 = arith.constant 1 : index
    %25 = memref.load %arg2[%c1_15, %c1_16] : memref<8x3xf32, #tpu.memory_space<smem>>
    %26 = vector.broadcast %25 : f32 to vector<1x128xf32>
    %27 = arith.mulf %26, %6 : vector<1x128xf32>
    %28 = arith.addf %24, %27 : vector<1x128xf32>
    %c1_17 = arith.constant 1 : index
    %c2_18 = arith.constant 2 : index
    %29 = memref.load %arg2[%c1_17, %c2_18] : memref<8x3xf32, #tpu.memory_space<smem>>
    %30 = vector.broadcast %29 : f32 to vector<1x128xf32>
    %31 = arith.mulf %30, %7 : vector<1x128xf32>
    %32 = arith.addf %28, %31 : vector<1x128xf32>
    %c0_19 = arith.constant 0 : index
    %c1_20 = arith.constant 1 : index
    %c0_21 = arith.constant 0 : index
    %33 = vector.load %arg5[%c0_19, %c1_20, %c0_21] : memref<1x8x128xf32, #tpu.memory_space<vmem>>, vector<1x1x128xf32>
    %34 = vector.shape_cast %33 : vector<1x1x128xf32> to vector<1x128xf32>
    %35 = vector.shape_cast %32 : vector<1x128xf32> to vector<1x1x128xf32>
    tpu.vector_store %arg5[%c0_19, %c1_20, %c0_21], %35 {strides = array<i32>} : memref<1x8x128xf32, #tpu.memory_space<vmem>>, vector<1x1x128xf32>,
    %c2_22 = arith.constant 2 : index
    %c0_23 = arith.constant 0 : index
    %36 = memref.load %arg2[%c2_22, %c0_23] : memref<8x3xf32, #tpu.memory_space<smem>>
    %37 = vector.broadcast %36 : f32 to vector<1x128xf32>
    %38 = arith.mulf %37, %5 : vector<1x128xf32>
    %c2_24 = arith.constant 2 : index
    %c1_25 = arith.constant 1 : index
    %39 = memref.load %arg2[%c2_24, %c1_25] : memref<8x3xf32, #tpu.memory_space<smem>>
    %40 = vector.broadcast %39 : f32 to vector<1x128xf32>
    %41 = arith.mulf %40, %6 : vector<1x128xf32>
    %42 = arith.addf %38, %41 : vector<1x128xf32>
    %c2_26 = arith.constant 2 : index
    %c2_27 = arith.constant 2 : index
    %43 = memref.load %arg2[%c2_26, %c2_27] : memref<8x3xf32, #tpu.memory_space<smem>>
    %44 = vector.broadcast %43 : f32 to vector<1x128xf32>
    %45 = arith.mulf %44, %7 : vector<1x128xf32>
    %46 = arith.addf %42, %45 : vector<1x128xf32>
    %c0_28 = arith.constant 0 : index
    %c2_29 = arith.constant 2 : index
    %c0_30 = arith.constant 0 : index
    %47 = vector.load %arg5[%c0_28, %c2_29, %c0_30] : memref<1x8x128xf32, #tpu.memory_space<vmem>>, vector<1x1x128xf32>
    %48 = vector.shape_cast %47 : vector<1x1x128xf32> to vector<1x128xf32>
    %49 = vector.shape_cast %46 : vector<1x128xf32> to vector<1x1x128xf32>
    tpu.vector_store %arg5[%c0_28, %c2_29, %c0_30], %49 {strides = array<i32>} : memref<1x8x128xf32, #tpu.memory_space<vmem>>, vector<1x1x128xf32>,
    %c3 = arith.constant 3 : index
    %c0_31 = arith.constant 0 : index
    %50 = memref.load %arg2[%c3, %c0_31] : memref<8x3xf32, #tpu.memory_space<smem>>
    %51 = vector.broadcast %50 : f32 to vector<1x128xf32>
    %52 = arith.mulf %51, %5 : vector<1x128xf32>
    %c3_32 = arith.constant 3 : index
    %c1_33 = arith.constant 1 : index
    %53 = memref.load %arg2[%c3_32, %c1_33] : memref<8x3xf32, #tpu.memory_space<smem>>
    %54 = vector.broadcast %53 : f32 to vector<1x128xf32>
    %55 = arith.mulf %54, %6 : vector<1x128xf32>
    %56 = arith.addf %52, %55 : vector<1x128xf32>
    %c3_34 = arith.constant 3 : index
    %c2_35 = arith.constant 2 : index
    %57 = memref.load %arg2[%c3_34, %c2_35] : memref<8x3xf32, #tpu.memory_space<smem>>
    %58 = vector.broadcast %57 : f32 to vector<1x128xf32>
    %59 = arith.mulf %58, %7 : vector<1x128xf32>
    %60 = arith.addf %56, %59 : vector<1x128xf32>
    %c0_36 = arith.constant 0 : index
    %c3_37 = arith.constant 3 : index
    %c0_38 = arith.constant 0 : index
    %61 = vector.load %arg5[%c0_36, %c3_37, %c0_38] : memref<1x8x128xf32, #tpu.memory_space<vmem>>, vector<1x1x128xf32>
    %62 = vector.shape_cast %61 : vector<1x1x128xf32> to vector<1x128xf32>
    %63 = vector.shape_cast %60 : vector<1x128xf32> to vector<1x1x128xf32>
    tpu.vector_store %arg5[%c0_36, %c3_37, %c0_38], %63 {strides = array<i32>} : memref<1x8x128xf32, #tpu.memory_space<vmem>>, vector<1x1x128xf32>,
    %c4 = arith.constant 4 : index
    %c0_39 = arith.constant 0 : index
    %64 = memref.load %arg2[%c4, %c0_39] : memref<8x3xf32, #tpu.memory_space<smem>>
    %65 = vector.broadcast %64 : f32 to vector<1x128xf32>
    %66 = arith.mulf %65, %5 : vector<1x128xf32>
    %c4_40 = arith.constant 4 : index
    %c1_41 = arith.constant 1 : index
    %67 = memref.load %arg2[%c4_40, %c1_41] : memref<8x3xf32, #tpu.memory_space<smem>>
    %68 = vector.broadcast %67 : f32 to vector<1x128xf32>
    %69 = arith.mulf %68, %6 : vector<1x128xf32>
    %70 = arith.addf %66, %69 : vector<1x128xf32>
    %c4_42 = arith.constant 4 : index
    %c2_43 = arith.constant 2 : index
    %71 = memref.load %arg2[%c4_42, %c2_43] : memref<8x3xf32, #tpu.memory_space<smem>>
    %72 = vector.broadcast %71 : f32 to vector<1x128xf32>
    %73 = arith.mulf %72, %7 : vector<1x128xf32>
    %74 = arith.addf %70, %73 : vector<1x128xf32>
    %c0_44 = arith.constant 0 : index
    %c4_45 = arith.constant 4 : index
    %c0_46 = arith.constant 0 : index
    %75 = vector.load %arg5[%c0_44, %c4_45, %c0_46] : memref<1x8x128xf32, #tpu.memory_space<vmem>>, vector<1x1x128xf32>
    %76 = vector.shape_cast %75 : vector<1x1x128xf32> to vector<1x128xf32>
    %77 = vector.shape_cast %74 : vector<1x128xf32> to vector<1x1x128xf32>
    tpu.vector_store %arg5[%c0_44, %c4_45, %c0_46], %77 {strides = array<i32>} : memref<1x8x128xf32, #tpu.memory_space<vmem>>, vector<1x1x128xf32>,
    %c5 = arith.constant 5 : index
    %c0_47 = arith.constant 0 : index
    %78 = memref.load %arg2[%c5, %c0_47] : memref<8x3xf32, #tpu.memory_space<smem>>
    %79 = vector.broadcast %78 : f32 to vector<1x128xf32>
    %80 = arith.mulf %79, %5 : vector<1x128xf32>
    %c5_48 = arith.constant 5 : index
    %c1_49 = arith.constant 1 : index
    %81 = memref.load %arg2[%c5_48, %c1_49] : memref<8x3xf32, #tpu.memory_space<smem>>
    %82 = vector.broadcast %81 : f32 to vector<1x128xf32>
    %83 = arith.mulf %82, %6 : vector<1x128xf32>
    %84 = arith.addf %80, %83 : vector<1x128xf32>
    %c5_50 = arith.constant 5 : index
    %c2_51 = arith.constant 2 : index
    %85 = memref.load %arg2[%c5_50, %c2_51] : memref<8x3xf32, #tpu.memory_space<smem>>
    %86 = vector.broadcast %85 : f32 to vector<1x128xf32>
    %87 = arith.mulf %86, %7 : vector<1x128xf32>
    %88 = arith.addf %84, %87 : vector<1x128xf32>
    %c0_52 = arith.constant 0 : index
    %c5_53 = arith.constant 5 : index
    %c0_54 = arith.constant 0 : index
    %89 = vector.load %arg5[%c0_52, %c5_53, %c0_54] : memref<1x8x128xf32, #tpu.memory_space<vmem>>, vector<1x1x128xf32>
    %90 = vector.shape_cast %89 : vector<1x1x128xf32> to vector<1x128xf32>
    %91 = vector.shape_cast %88 : vector<1x128xf32> to vector<1x1x128xf32>
    tpu.vector_store %arg5[%c0_52, %c5_53, %c0_54], %91 {strides = array<i32>} : memref<1x8x128xf32, #tpu.memory_space<vmem>>, vector<1x1x128xf32>,
    %c6 = arith.constant 6 : index
    %c0_55 = arith.constant 0 : index
    %92 = memref.load %arg2[%c6, %c0_55] : memref<8x3xf32, #tpu.memory_space<smem>>
    %93 = vector.broadcast %92 : f32 to vector<1x128xf32>
    %94 = arith.mulf %93, %5 : vector<1x128xf32>
    %c6_56 = arith.constant 6 : index
    %c1_57 = arith.constant 1 : index
    %95 = memref.load %arg2[%c6_56, %c1_57] : memref<8x3xf32, #tpu.memory_space<smem>>
    %96 = vector.broadcast %95 : f32 to vector<1x128xf32>
    %97 = arith.mulf %96, %6 : vector<1x128xf32>
    %98 = arith.addf %94, %97 : vector<1x128xf32>
    %c6_58 = arith.constant 6 : index
    %c2_59 = arith.constant 2 : index
    %99 = memref.load %arg2[%c6_58, %c2_59] : memref<8x3xf32, #tpu.memory_space<smem>>
    %100 = vector.broadcast %99 : f32 to vector<1x128xf32>
    %101 = arith.mulf %100, %7 : vector<1x128xf32>
    %102 = arith.addf %98, %101 : vector<1x128xf32>
    %c0_60 = arith.constant 0 : index
    %c6_61 = arith.constant 6 : index
    %c0_62 = arith.constant 0 : index
    %103 = vector.load %arg5[%c0_60, %c6_61, %c0_62] : memref<1x8x128xf32, #tpu.memory_space<vmem>>, vector<1x1x128xf32>
    %104 = vector.shape_cast %103 : vector<1x1x128xf32> to vector<1x128xf32>
    %105 = vector.shape_cast %102 : vector<1x128xf32> to vector<1x1x128xf32>
    tpu.vector_store %arg5[%c0_60, %c6_61, %c0_62], %105 {strides = array<i32>} : memref<1x8x128xf32, #tpu.memory_space<vmem>>, vector<1x1x128xf32>,
    %c7 = arith.constant 7 : index
    %c0_63 = arith.constant 0 : index
    %106 = memref.load %arg2[%c7, %c0_63] : memref<8x3xf32, #tpu.memory_space<smem>>
    %107 = vector.broadcast %106 : f32 to vector<1x128xf32>
    %108 = arith.mulf %107, %5 : vector<1x128xf32>
    %c7_64 = arith.constant 7 : index
    %c1_65 = arith.constant 1 : index
    %109 = memref.load %arg2[%c7_64, %c1_65] : memref<8x3xf32, #tpu.memory_space<smem>>
    %110 = vector.broadcast %109 : f32 to vector<1x128xf32>
    %111 = arith.mulf %110, %6 : vector<1x128xf32>
    %112 = arith.addf %108, %111 : vector<1x128xf32>
    %c7_66 = arith.constant 7 : index
    %c2_67 = arith.constant 2 : index
    %113 = memref.load %arg2[%c7_66, %c2_67] : memref<8x3xf32, #tpu.memory_space<smem>>
    %114 = vector.broadcast %113 : f32 to vector<1x128xf32>
    %115 = arith.mulf %114, %7 : vector<1x128xf32>
    %116 = arith.addf %112, %115 : vector<1x128xf32>
    %c0_68 = arith.constant 0 : index
    %c7_69 = arith.constant 7 : index
    %c0_70 = arith.constant 0 : index
    %117 = vector.load %arg5[%c0_68, %c7_69, %c0_70] : memref<1x8x128xf32, #tpu.memory_space<vmem>>, vector<1x1x128xf32>
    %118 = vector.shape_cast %117 : vector<1x1x128xf32> to vector<1x128xf32>
    %119 = vector.shape_cast %116 : vector<1x128xf32> to vector<1x1x128xf32>
    tpu.vector_store %arg5[%c0_68, %c7_69, %c0_70], %119 {strides = array<i32>} : memref<1x8x128xf32, #tpu.memory_space<vmem>>, vector<1x1x128xf32>,
    return
  }
  func.func @transform_0(%arg0: i32, %arg1: i32) -> (i32, i32) {
    %c0_i32 = arith.constant 0 : i32
    %c0_i32_0 = arith.constant 0 : i32
    %c0_i32_1 = arith.constant 0 : i32
    return %c0_i32, %c0_i32_0 : i32, i32
  }
  func.func @transform_1(%arg0: i32, %arg1: i32) -> (i32, i32, i32) {
    %c0_i32 = arith.constant 0 : i32
    %c0_i32_0 = arith.constant 0 : i32
    return %arg0, %c0_i32, %arg1 : i32, i32, i32
  }
  func.func @transform_2(%arg0: i32, %arg1: i32) -> (i32, i32, i32) {
    %c1_i32 = arith.constant 1 : i32
    %0 = arith.addi %arg1, %c1_i32 : i32
    %c1_i32_0 = arith.constant 1 : i32
    %1 = arith.muli %0, %c1_i32_0 : i32
    %c0_i32 = arith.constant 0 : i32
    %c0_i32_1 = arith.constant 0 : i32
    return %arg0, %c0_i32, %1 : i32, i32, i32
  }
  func.func @transform_3(%arg0: i32, %arg1: i32) -> (i32, i32, i32) {
    %c0_i32 = arith.constant 0 : i32
    %c0_i32_0 = arith.constant 0 : i32
    return %arg0, %c0_i32, %arg1 : i32, i32, i32
  }
}

</mosaic_0001>

<llo_original>
// kernel: tpu_custom_call.1
$region0: #{tpu_custom_call.1}
  #allocation0 [shape = 'u32[]', space=smem, size = 0x4, offset = 0x4, fixed_abs, tag = 'smem constant byte address 0x4 - core index']
  #allocation1 [shape = 'u32[72,128]{1,0:T(1,128)}', space=vmem, size = 0x9000, scoped, tag = 'internal scratch']
  %s0 = inlined_call_operand.vmem [shape: f32[8,3], index: 0, kind: input, shape index: {}]
  %s1 = inlined_call_operand.hbm [shape: f32[2,4,256], index: 1, kind: input, shape index: {}]
  %s2 = inlined_call_operand.hbm [shape: f32[2,4,256], index: 2, kind: input, shape index: {}]
  %s3 = inlined_call_operand.hbm [shape: f32[2,8,14], index: 3, kind: output, shape index: {}]
  %s4 = sld [smem:[#allocation0]]
  $region57: #{tpu_custom_call.1} parent=0
    _
  %s6 = ssub.s32 1, %s4
  %s7 = scalar_select 0, %s6, %s4
  $region1: #{tpu_custom_call.1} parent=0
    #allocation2 [shape = 'u8[4096]{0}', space=smem, size = 0x1000, scoped, tag = 'input window, operand 0, single buffered']
    #allocation3 [shape = 's32[2]{0}', space=sflag, size = 0x8, scoped, tag = 'scoped memory for tpu_custom_call.1']
    #allocation4 [shape = 's32[2]{0}', space=sflag, size = 0x8, scoped, tag = 'scoped memory for tpu_custom_call.1']
    #allocation5 [shape = 's32[2]{0}', space=sflag, size = 0x8, scoped, tag = 'scoped memory for tpu_custom_call.1']
    #allocation6 [shape = 'u8[4096]{0}', space=vmem, size = 0x1000, scoped, tag = 'input window, operand 1']
    #allocation7 [shape = 'u8[4096]{0}', space=vmem, size = 0x1000, scoped, tag = 'input window, operand 2']
    #allocation8 [shape = 's32[2]{0}', space=sflag, size = 0x8, scoped, tag = 'scoped memory for tpu_custom_call.1']
    #allocation9 [shape = 'u8[8192]{0}', space=vmem, size = 0x2000, scoped, tag = 'output window, operand 0']
    %8 = vsyncpa [#allocation5], 0
    %9 = vsyncpa [#allocation3], 0
    %s10 = scalar_lea.sflag [#allocation3], 1
    %11 = vsyncpa %s10, 0
    %12 = vsyncpa [#allocation8], 0
    %s13 = scalar_lea.sflag [#allocation8], 1
    %14 = vsyncpa %s13, 0
    %15 = vsyncpa [#allocation4], 0
    %s16 = scalar_lea.sflag [#allocation4], 1
    %17 = vsyncpa %s16, 0
    loop: start=0, step=1, limit=4
    $region2: #{tpu_custom_call.1} parent=1 // loop_pre_header
      _
    $region3: #{tpu_custom_call.1} parent=1 // loop_header
      %s19 = sphi 0, %s23
      %p20 = scmp.ge.s32.totalorder %s19, 4
      %s26 = sphi 0, %s38
      %s27 = sphi 0, %s34
      %s28 = sphi 0, %s26
      %s29 = sphi 0, %s27
      %s30 = sphi 0, %s28
      %s31 = sphi 0, %s29
      %s39 = sphi 0, %s39
      %s41 = sphi 0, %s39
      %s42 = sphi 0, %s41
      %s56 = sphi 0, %s42
      %s64 = sphi 0, %s66
      %s67 = sphi 0, %s64
      %s68 = sphi 0, %s67
      %s84 = sphi 0, %s68
      %s94 = sphi 0, %s96
      %s97 = sphi 0, %s94
      %s98 = sphi 0, %s97
      %s114 = sphi 0, %s98
      %s122 = sphi 0, %s124
      %s125 = sphi 0, %s122
      %s126 = sphi 0, %s125
      %s142 = sphi 0, %s126
    $region4: #{tpu_custom_call.1} parent=1 // loop_header_branch
      %22 = sbr.rel (%p20) target = $region8
    $region5: #{tpu_custom_call.1} parent=1 // loop_body
      %s24 = ssub.s32 %s19, 1
      %s25 = ssub.s32 %s19, 2
      %s32 = sadd.s32 1, %s27
      %p33 = scmp.ge.s32.totalorder %s32, 1
      %s34 = scalar_select %p33, 0, %s32
      %s35 = sadd.s32 1, %s26
      %s36 = scalar_select %p33, %s35, %s26
      %p37 = scmp.ge.s32.totalorder %s36, 2
      %s38 = scalar_select %p37, 0, %s36
      %s40 = sadd.s32 %s39, 1
      %p43 = scmp.eq.s32.totalorder %s19, 1
      %p44 = scmp.ne.s32.totalorder %s39, %s41
      %p45 = scmp.eq.s32.totalorder %s19, 0
      %p46 = por %p44, %p45
      %p47 = scmp.ne.s32.totalorder %s39, %s41
      %p48 = scmp.eq.s32.totalorder %s24, 1
      %p49 = por %p47, %p48
      %p50 = scmp.ne.s32.totalorder %s41, %s42
      %p51 = scmp.eq.s32.totalorder %s24, 0
      %p52 = por %p50, %p51
      %p53 = scmp.ne.s32.totalorder %s41, %s42
      %p54 = scmp.eq.s32.totalorder %s25, 1
      %p55 = por %p53, %p54
      %p57 = scmp.ne.s32.totalorder %s42, %s56
      %p58 = scmp.eq.s32.totalorder %s25, 0
      %p59 = por %p57, %p58
      %s60 = ssub.s32 %s26, %s38
      %s61 = ssub.s32 %s27, %s34
      %s62 = sor.u32 %s60, %s61
      %p63 = scmp.eq.s32.totalorder %s62, 0
      %s65 = sadd.s32 %s64, 1
      %s66 = scalar_select %p63, %s64, %s65
      %p69 = pneg %p63
      %p70 = scmp.eq.s32.totalorder %s19, 1
      %p71 = por %p69, %p70
      %p72 = scmp.ne.s32.totalorder %s64, %s67
      %p73 = scmp.eq.s32.totalorder %s19, 0
      %p74 = por %p72, %p73
      %p75 = scmp.ne.s32.totalorder %s64, %s67
      %p76 = scmp.eq.s32.totalorder %s24, 1
      %p77 = por %p75, %p76
      %p78 = scmp.ne.s32.totalorder %s67, %s68
      %p79 = scmp.eq.s32.totalorder %s24, 0
      %p80 = por %p78, %p79
      %p81 = scmp.ne.s32.totalorder %s67, %s68
      %p82 = scmp.eq.s32.totalorder %s25, 1
      %p83 = por %p81, %p82
      %p85 = scmp.ne.s32.totalorder %s68, %s84
      %p86 = scmp.eq.s32.totalorder %s25, 0
      %p87 = por %p85, %p86
      %s88 = sadd.s32 %s27, 1
      %s89 = sadd.s32 %s34, 1
      %s90 = ssub.s32 %s26, %s38
      %s91 = ssub.s32 %s88, %s89
      %s92 = sor.u32 %s90, %s91
      %p93 = scmp.eq.s32.totalorder %s92, 0
      %s95 = sadd.s32 %s94, 1
      %s96 = scalar_select %p93, %s94, %s95
      %p99 = pneg %p93
      %p100 = scmp.eq.s32.totalorder %s19, 1
      %p101 = por %p99, %p100
      %p102 = scmp.ne.s32.totalorder %s94, %s97
      %p103 = scmp.eq.s32.totalorder %s19, 0
      %p104 = por %p102, %p103
      %p105 = scmp.ne.s32.totalorder %s94, %s97
      %p106 = scmp.eq.s32.totalorder %s24, 1
      %p107 = por %p105, %p106
      %p108 = scmp.ne.s32.totalorder %s97, %s98
      %p109 = scmp.eq.s32.totalorder %s24, 0
      %p110 = por %p108, %p109
      %p111 = scmp.ne.s32.totalorder %s97, %s98
      %p112 = scmp.eq.s32.totalorder %s25, 1
      %p113 = por %p111, %p112
      %p115 = scmp.ne.s32.totalorder %s98, %s114
      %p116 = scmp.eq.s32.totalorder %s25, 0
      %p117 = por %p115, %p116
      %s118 = ssub.s32 %s26, %s38
      %s119 = ssub.s32 %s27, %s34
      %s120 = sor.u32 %s118, %s119
      %p121 = scmp.eq.s32.totalorder %s120, 0
      %s123 = sadd.s32 %s122, 1
      %s124 = scalar_select %p121, %s122, %s123
      %p127 = pneg %p121
      %p128 = scmp.eq.s32.totalorder %s19, 1
      %p129 = por %p127, %p128
      %p130 = scmp.ne.s32.totalorder %s122, %s125
      %p131 = scmp.eq.s32.totalorder %s19, 0
      %p132 = por %p130, %p131
      %p133 = scmp.ne.s32.totalorder %s122, %s125
      %p134 = scmp.eq.s32.totalorder %s24, 1
      %p135 = por %p133, %p134
      %p136 = scmp.ne.s32.totalorder %s125, %s126
      %p137 = scmp.eq.s32.totalorder %s24, 0
      %p138 = por %p136, %p137
      %p139 = scmp.ne.s32.totalorder %s125, %s126
      %p140 = scmp.eq.s32.totalorder %s25, 1
      %p141 = por %p139, %p140
      %p143 = scmp.ne.s32.totalorder %s126, %s142
      %p144 = scmp.eq.s32.totalorder %s25, 0
      %p145 = por %p143, %p144
      %p146 = scmp.le.s32.totalorder 1, %s19
      %p147 = scmp.lt.s32.totalorder %s19, 3
      %p148 = pnand %p146, %p147
      %p149 = pneg %p148
      // Predicated region
      $region9: #{tpu_custom_call.1} parent=5 // pred_check
        _
      $region10: #{tpu_custom_call.1} parent=5 // pred_check_branch
        %151 = sbr.rel (%p148) target = $region12
      $region11: #{tpu_custom_call.1} parent=5 // pred_region
        %s152 = ssub.s32 %s19, 1
        // Predicated region
        $region13: #{tpu_custom_call.1} parent=11 // pred_check
          %p153 = pneg %p52
        $region14: #{tpu_custom_call.1} parent=11 // pred_check_branch
          %155 = sbr.rel (%p153) target = $region16
        $region15: #{tpu_custom_call.1} parent=11 // pred_region
          %157 = vsyncadd [#allocation5], 0
          %s159 = sshll.u32 %s0, 4
          %s160 = int_to_ptr.vmem [resolvable:$true] %s159
          %162 = dma.vmem_to_smem %s160, 128, [#allocation2], [#allocation5]
        $region16: #{tpu_custom_call.1} parent=11 // pred_fallthru
          _
      $region12: #{tpu_custom_call.1} parent=5 // pred_fallthru
        _
      %p163 = scmp.lt.s32.totalorder %s19, 2
      // Predicated region
      $region17: #{tpu_custom_call.1} parent=5 // pred_check
        %p164 = pneg %p163
      $region18: #{tpu_custom_call.1} parent=5 // pred_check_branch
        %166 = sbr.rel (%p164) target = $region20
      $region19: #{tpu_custom_call.1} parent=5 // pred_region
        // Predicated region
        $region21: #{tpu_custom_call.1} parent=19 // pred_check
          %p167 = pneg %p74
        $region22: #{tpu_custom_call.1} parent=19 // pred_check_branch
          %169 = sbr.rel (%p167) target = $region24
        $region23: #{tpu_custom_call.1} parent=19 // pred_region
          %s170 = sand.u32 %s64, 1
          %s171 = scalar_lea.sflag [#allocation3], %s170
          %s172 = sand.u32 %s64, 1
          %s173 = smul.addr %s172, 4
          %s174 = scalar_lea.vmem [#allocation6], %s173
          %176 = vsyncadd %s171, 0
          %s177 = smul.addr %s26, 2
          %s178 = sadd.s32 %s27, %s177
          %s179 = smul.addr %s178, 4
          %s180 = scalar_lea.hbm %s1, %s179
          %s182 = sshll.u32 %s180, 4
          %s183 = int_to_ptr.hbm [resolvable:$true] %s182
          %s184 = sshll.u32 %s174, 4
          %s185 = int_to_ptr.vmem [resolvable:$true] %s184
          %187 = dma.hbm_to_vmem [thread:$0]  %s183, 64, %s185, %s171
        $region24: #{tpu_custom_call.1} parent=19 // pred_fallthru
          _
        // Predicated region
        $region25: #{tpu_custom_call.1} parent=19 // pred_check
          %p188 = pneg %p104
        $region26: #{tpu_custom_call.1} parent=19 // pred_check_branch
          %190 = sbr.rel (%p188) target = $region28
        $region27: #{tpu_custom_call.1} parent=19 // pred_region
          %s191 = sand.u32 %s94, 1
          %s192 = scalar_lea.sflag [#allocation8], %s191
          %s193 = sand.u32 %s94, 1
          %s194 = smul.addr %s193, 4
          %s195 = scalar_lea.vmem [#allocation7], %s194
          %s196 = sadd.s32 %s27, 1
          %198 = vsyncadd %s192, 0
          %s199 = smul.addr %s26, 2
          %s200 = sadd.s32 %s196, %s199
          %s201 = smul.addr %s200, 4
          %s202 = scalar_lea.hbm %s2, %s201
          %s204 = sshll.u32 %s202, 4
          %s205 = int_to_ptr.hbm [resolvable:$true] %s204
          %s206 = sshll.u32 %s195, 4
          %s207 = int_to_ptr.vmem [resolvable:$true] %s206
          %209 = dma.hbm_to_vmem [thread:$0]  %s205, 64, %s207, %s192
        $region28: #{tpu_custom_call.1} parent=19 // pred_fallthru
          _
      $region20: #{tpu_custom_call.1} parent=5 // pred_fallthru
        _
      %p210 = scmp.le.s32.totalorder 1, %s19
      %p211 = scmp.lt.s32.totalorder %s19, 3
      %p212 = pnand %p210, %p211
      %p213 = pneg %p212
      // Predicated region
      $region29: #{tpu_custom_call.1} parent=5 // pred_check
        _
      $region30: #{tpu_custom_call.1} parent=5 // pred_check_branch
        %215 = sbr.rel (%p212) target = $region32
      $region31: #{tpu_custom_call.1} parent=5 // pred_region
        %s216 = ssub.s32 %s19, 1
        // Predicated region
        $region33: #{tpu_custom_call.1} parent=31 // pred_check
          %p217 = pneg %p52
        $region34: #{tpu_custom_call.1} parent=31 // pred_check_branch
          %219 = sbr.rel (%p217) target = $region36
        $region35: #{tpu_custom_call.1} parent=31 // pred_region
          %221 = dma.done [#allocation5], 128
        $region36: #{tpu_custom_call.1} parent=31 // pred_fallthru
          _
        %s222 = sand.u32 %s67, 1
        %s223 = scalar_lea.sflag [#allocation3], %s222
        %s224 = sand.u32 %s67, 1
        %s225 = smul.addr %s224, 4
        %s226 = scalar_lea.vmem [#allocation6], %s225
        // Predicated region
        $region37: #{tpu_custom_call.1} parent=31 // pred_check
          %p227 = pneg %p80
        $region38: #{tpu_custom_call.1} parent=31 // pred_check_branch
          %229 = sbr.rel (%p227) target = $region40
        $region39: #{tpu_custom_call.1} parent=31 // pred_region
          %231 = dma.done %s223, 64
        $region40: #{tpu_custom_call.1} parent=31 // pred_fallthru
          _
        %s232 = sand.u32 %s97, 1
        %s233 = scalar_lea.sflag [#allocation8], %s232
        %s234 = sand.u32 %s97, 1
        %s235 = smul.addr %s234, 4
        %s236 = scalar_lea.vmem [#allocation7], %s235
        // Predicated region
        $region41: #{tpu_custom_call.1} parent=31 // pred_check
          %p237 = pneg %p110
        $region42: #{tpu_custom_call.1} parent=31 // pred_check_branch
          %239 = sbr.rel (%p237) target = $region44
        $region43: #{tpu_custom_call.1} parent=31 // pred_region
          %241 = dma.done %s233, 64
        $region44: #{tpu_custom_call.1} parent=31 // pred_fallthru
          _
        %242 = sfence
        %p243 = pneg %p52
        %p244 = pneg %p49
        %s245 = sand.u32 %s67, 1
        %s246 = scalar_lea.sflag [#allocation3], %s245
        %s247 = sand.u32 %s67, 1
        %s248 = smul.addr %s247, 4
        %s249 = scalar_lea.vmem [#allocation6], %s248
        %p250 = pneg %p80
        %p251 = pneg %p77
        %s252 = sand.u32 %s97, 1
        %s253 = scalar_lea.sflag [#allocation8], %s252
        %s254 = sand.u32 %s97, 1
        %s255 = smul.addr %s254, 4
        %s256 = scalar_lea.vmem [#allocation7], %s255
        %p257 = pneg %p110
        %p258 = pneg %p107
        %p259 = pneg %p138
        %p260 = pneg %p135
        %s261 = sand.u32 %s125, 1
        %s262 = scalar_lea.sflag [#allocation4], %s261
        %s263 = sand.u32 %s125, 1
        %s264 = smul.addr %s263, 8
        %s265 = scalar_lea.vmem [#allocation9], %s264
        %s266 = sadd.s32 %s29, 1
        %v267 = vld [vmem:[%s226] sm:$0xf]
        %vm268 = vcmask 1043456
        %v269 = vsel %vm268, %v267, 0.0
        %v270 = vrot.slane %v269, 4
        %v271 = vadd.f32 %v269, %v270
        %v272 = vrot.slane %v271, 2
        %v273 = vadd.f32 %v271, %v272
        %v274 = vrot.slane %v273, 1
        %v275 = vadd.f32 %v273, %v274
        %v276 = vld [vmem:[%s236] sm:$0xf]
        %v277 = vsel %vm268, %v276, 0.0
        %v278 = vrot.slane %v277, 4
        %v279 = vadd.f32 %v277, %v278
        %v280 = vrot.slane %v279, 2
        %v281 = vadd.f32 %v279, %v280
        %v282 = vrot.slane %v281, 1
        %v283 = vadd.f32 %v281, %v282
        %s284 = sld [smem:[#allocation2]]
        %v285 = vstv %s284
        %v286 = vmul.f32 %v285, %v275
        %s287 = sld [smem:[#allocation2 + $0x1]]
        %v288 = vstv %s287
        %v289 = vmul.f32 %v288, %v275
        %v290 = vmul.f32 %v288, %v283
        %293 = vrot.lane.b32.xlu0 %v289, 127
        %v294 = vpop.permute.xlu0 %293
        %295 = vrot.lane.b32.xlu0 %v290, 127
        %v296 = vpop.permute.xlu0 %295
        %vm297 = vcmask 1039360
        %v298 = vsel %vm297, %v294, %v296
        %v300 = vadd.f32 %v286, %v298
        %s301 = sld [smem:[#allocation2 + $0x2]]
        %v302 = vstv %s301
        %v303 = vmul.f32 %v302, %v275
        %v304 = vmul.f32 %v302, %v283
        %307 = vrot.lane.b32.xlu0 %v303, 126
        %v308 = vpop.permute.xlu0 %307
        %309 = vrot.lane.b32.xlu0 %v304, 126
        %v310 = vpop.permute.xlu0 %309
        %vm311 = vcmask 1031168
        %v312 = vsel %vm311, %v308, %v310
        %v314 = vadd.f32 %v300, %v312
        %315 = vst [vmem:[%s265] sm:$0x1] %v314
        %s316 = sld [smem:[#allocation2 + $0x80]]
        %v317 = vstv %s316
        %v318 = vmul.f32 %v317, %v275
        %s319 = sld [smem:[#allocation2 + $0x81]]
        %v320 = vstv %s319
        %v321 = vmul.f32 %v320, %v275
        %v322 = vmul.f32 %v320, %v283
        %325 = vrot.lane.b32.xlu0 %v321, 127
        %v326 = vpop.permute.xlu0 %325
        %327 = vrot.lane.b32.xlu0 %v322, 127
        %v328 = vpop.permute.xlu0 %327
        %v329 = vsel %vm297, %v326, %v328
        %v331 = vadd.f32 %v318, %v329
        %s332 = sld [smem:[#allocation2 + $0x82]]
        %v333 = vstv %s332
        %v334 = vmul.f32 %v333, %v275
        %v335 = vmul.f32 %v333, %v283
        %338 = vrot.lane.b32.xlu0 %v334, 126
        %v339 = vpop.permute.xlu0 %338
        %340 = vrot.lane.b32.xlu0 %v335, 126
        %v341 = vpop.permute.xlu0 %340
        %v342 = vsel %vm311, %v339, %v341
        %v344 = vadd.f32 %v331, %v342
        %345 = vst [vmem:[%s265 + $0x1] sm:$0x1] %v344
        %s346 = sld [smem:[#allocation2 + $0x100]]
        %v347 = vstv %s346
        %v348 = vmul.f32 %v347, %v275
        %s349 = sld [smem:[#allocation2 + $0x101]]
        %v350 = vstv %s349
        %v351 = vmul.f32 %v350, %v275
        %v352 = vmul.f32 %v350, %v283
        %355 = vrot.lane.b32.xlu0 %v351, 127
        %v356 = vpop.permute.xlu0 %355
        %357 = vrot.lane.b32.xlu0 %v352, 127
        %v358 = vpop.permute.xlu0 %357
        %v359 = vsel %vm297, %v356, %v358
        %v361 = vadd.f32 %v348, %v359
        %s362 = sld [smem:[#allocation2 + $0x102]]
        %v363 = vstv %s362
        %v364 = vmul.f32 %v363, %v275
        %v365 = vmul.f32 %v363, %v283
        %368 = vrot.lane.b32.xlu0 %v364, 126
        %v369 = vpop.permute.xlu0 %368
        %370 = vrot.lane.b32.xlu0 %v365, 126
        %v371 = vpop.permute.xlu0 %370
        %v372 = vsel %vm311, %v369, %v371
        %v374 = vadd.f32 %v361, %v372
        %375 = vst [vmem:[%s265 + $0x2] sm:$0x1] %v374
        %s376 = sld [smem:[#allocation2 + $0x180]]
        %v377 = vstv %s376
        %v378 = vmul.f32 %v377, %v275
        %s379 = sld [smem:[#allocation2 + $0x181]]
        %v380 = vstv %s379
        %v381 = vmul.f32 %v380, %v275
        %v382 = vmul.f32 %v380, %v283
        %385 = vrot.lane.b32.xlu0 %v381, 127
        %v386 = vpop.permute.xlu0 %385
        %387 = vrot.lane.b32.xlu0 %v382, 127
        %v388 = vpop.permute.xlu0 %387
        %v389 = vsel %vm297, %v386, %v388
        %v391 = vadd.f32 %v378, %v389
        %s392 = sld [smem:[#allocation2 + $0x182]]
        %v393 = vstv %s392
        %v394 = vmul.f32 %v393, %v275
        %v395 = vmul.f32 %v393, %v283
        %398 = vrot.lane.b32.xlu0 %v394, 126
        %v399 = vpop.permute.xlu0 %398
        %400 = vrot.lane.b32.xlu0 %v395, 126
        %v401 = vpop.permute.xlu0 %400
        %v402 = vsel %vm311, %v399, %v401
        %v404 = vadd.f32 %v391, %v402
        %405 = vst [vmem:[%s265 + $0x3] sm:$0x1] %v404
        %s406 = sld [smem:[#allocation2 + $0x200]]
        %v407 = vstv %s406
        %v408 = vmul.f32 %v407, %v275
        %s409 = sld [smem:[#allocation2 + $0x201]]
        %v410 = vstv %s409
        %v411 = vmul.f32 %v410, %v275
        %v412 = vmul.f32 %v410, %v283
        %415 = vrot.lane.b32.xlu0 %v411, 127
        %v416 = vpop.permute.xlu0 %415
        %417 = vrot.lane.b32.xlu0 %v412, 127
        %v418 = vpop.permute.xlu0 %417
        %v419 = vsel %vm297, %v416, %v418
        %v421 = vadd.f32 %v408, %v419
        %s422 = sld [smem:[#allocation2 + $0x202]]
        %v423 = vstv %s422
        %v424 = vmul.f32 %v423, %v275
        %v425 = vmul.f32 %v423, %v283
        %428 = vrot.lane.b32.xlu0 %v424, 126
        %v429 = vpop.permute.xlu0 %428
        %430 = vrot.lane.b32.xlu0 %v425, 126
        %v431 = vpop.permute.xlu0 %430
        %v432 = vsel %vm311, %v429, %v431
        %v434 = vadd.f32 %v421, %v432
        %435 = vst [vmem:[%s265 + $0x4] sm:$0x1] %v434
        %s436 = sld [smem:[#allocation2 + $0x280]]
        %v437 = vstv %s436
        %v438 = vmul.f32 %v437, %v275
        %s439 = sld [smem:[#allocation2 + $0x281]]
        %v440 = vstv %s439
        %v441 = vmul.f32 %v440, %v275
        %v442 = vmul.f32 %v440, %v283
        %445 = vrot.lane.b32.xlu0 %v441, 127
        %v446 = vpop.permute.xlu0 %445
        %447 = vrot.lane.b32.xlu0 %v442, 127
        %v448 = vpop.permute.xlu0 %447
        %v449 = vsel %vm297, %v446, %v448
        %v451 = vadd.f32 %v438, %v449
        %s452 = sld [smem:[#allocation2 + $0x282]]
        %v453 = vstv %s452
        %v454 = vmul.f32 %v453, %v275
        %v455 = vmul.f32 %v453, %v283
        %458 = vrot.lane.b32.xlu0 %v454, 126
        %v459 = vpop.permute.xlu0 %458
        %460 = vrot.lane.b32.xlu0 %v455, 126
        %v461 = vpop.permute.xlu0 %460
        %v462 = vsel %vm311, %v459, %v461
        %v464 = vadd.f32 %v451, %v462
        %465 = vst [vmem:[%s265 + $0x5] sm:$0x1] %v464
        %s466 = sld [smem:[#allocation2 + $0x300]]
        %v467 = vstv %s466
        %v468 = vmul.f32 %v467, %v275
        %s469 = sld [smem:[#allocation2 + $0x301]]
        %v470 = vstv %s469
        %v471 = vmul.f32 %v470, %v275
        %v472 = vmul.f32 %v470, %v283
        %475 = vrot.lane.b32.xlu0 %v471, 127
        %v476 = vpop.permute.xlu0 %475
        %477 = vrot.lane.b32.xlu0 %v472, 127
        %v478 = vpop.permute.xlu0 %477
        %v479 = vsel %vm297, %v476, %v478
        %v481 = vadd.f32 %v468, %v479
        %s482 = sld [smem:[#allocation2 + $0x302]]
        %v483 = vstv %s482
        %v484 = vmul.f32 %v483, %v275
        %v485 = vmul.f32 %v483, %v283
        %488 = vrot.lane.b32.xlu0 %v484, 126
        %v489 = vpop.permute.xlu0 %488
        %490 = vrot.lane.b32.xlu0 %v485, 126
        %v491 = vpop.permute.xlu0 %490
        %v492 = vsel %vm311, %v489, %v491
        %v494 = vadd.f32 %v481, %v492
        %495 = vst [vmem:[%s265 + $0x6] sm:$0x1] %v494
        %s496 = sld [smem:[#allocation2 + $0x380]]
        %v497 = vstv %s496
        %v498 = vmul.f32 %v497, %v275
        %s499 = sld [smem:[#allocation2 + $0x381]]
        %v500 = vstv %s499
        %v501 = vmul.f32 %v500, %v275
        %v502 = vmul.f32 %v500, %v283
        %505 = vrot.lane.b32.xlu0 %v501, 127
        %v506 = vpop.permute.xlu0 %505
        %507 = vrot.lane.b32.xlu0 %v502, 127
        %v508 = vpop.permute.xlu0 %507
        %v509 = vsel %vm297, %v506, %v508
        %v511 = vadd.f32 %v498, %v509
        %s512 = sld [smem:[#allocation2 + $0x382]]
        %v513 = vstv %s512
        %v514 = vmul.f32 %v513, %v275
        %v515 = vmul.f32 %v513, %v283
        %518 = vrot.lane.b32.xlu0 %v514, 126
        %v519 = vpop.permute.xlu0 %518
        %520 = vrot.lane.b32.xlu0 %v515, 126
        %v521 = vpop.permute.xlu0 %520
        %v522 = vsel %vm311, %v519, %v521
        %v524 = vadd.f32 %v511, %v522
        %525 = vst [vmem:[%s265 + $0x7] sm:$0x1] %v524
        %s526 = sand.u32 %s125, 1
        %s527 = scalar_lea.sflag [#allocation4], %s526
        %s528 = sand.u32 %s125, 1
        %s529 = smul.addr %s528, 8
        %s530 = scalar_lea.vmem [#allocation9], %s529
        // Predicated region
        $region45: #{tpu_custom_call.1} parent=31 // pred_check
          %p531 = pneg %p135
        $region46: #{tpu_custom_call.1} parent=31 // pred_check_branch
          %533 = sbr.rel (%p531) target = $region48
        $region47: #{tpu_custom_call.1} parent=31 // pred_region
          %535 = vsyncadd %s527, 0
          %s536 = sadd.s32 %s29, %s28
          %s537 = smul.addr %s536, 8
          %s538 = scalar_lea.hbm %s3, %s537
          %s540 = sshll.u32 %s530, 4
          %s541 = int_to_ptr.vmem [resolvable:$true] %s540
          %s542 = sshll.u32 %s538, 4
          %s543 = int_to_ptr.hbm [resolvable:$true] %s542
          %545 = dma.vmem_to_hbm [thread:$0]  %s541, 128, %s543, %s527
        $region48: #{tpu_custom_call.1} parent=31 // pred_fallthru
          _
      $region32: #{tpu_custom_call.1} parent=5 // pred_fallthru
        _
      %p546 = scmp.le.s32.totalorder 2, %s19
      // Predicated region
      $region49: #{tpu_custom_call.1} parent=5 // pred_check
        %p547 = pneg %p546
      $region50: #{tpu_custom_call.1} parent=5 // pred_check_branch
        %549 = sbr.rel (%p547) target = $region52
      $region51: #{tpu_custom_call.1} parent=5 // pred_region
        %s550 = ssub.s32 %s19, 2
        // Predicated region
        $region53: #{tpu_custom_call.1} parent=51 // pred_check
          %p551 = pneg %p141
        $region54: #{tpu_custom_call.1} parent=51 // pred_check_branch
          %553 = sbr.rel (%p551) target = $region56
        $region55: #{tpu_custom_call.1} parent=51 // pred_region
          %s554 = sand.u32 %s126, 1
          %s555 = scalar_lea.sflag [#allocation4], %s554
          %s556 = sand.u32 %s126, 1
          %s557 = smul.addr %s556, 8
          %s558 = scalar_lea.vmem [#allocation9], %s557
          %560 = dma.done %s555, 128
        $region56: #{tpu_custom_call.1} parent=51 // pred_fallthru
          _
      $region52: #{tpu_custom_call.1} parent=5 // pred_fallthru
        _
    $region6: #{tpu_custom_call.1} parent=1 // loop_footer
      %s23 = sadd.s32 1, %s19
    $region7: #{tpu_custom_call.1} parent=1 // loop_footer_branch
      %18 = sbr.rel target = $region3
    $region8: #{tpu_custom_call.1} parent=1 // loop_exit
      _
    %561 = vsyncpa [#allocation3], 1
    %s562 = scalar_lea.sflag [#allocation3], 1
    %563 = vsyncpa %s562, 1
    %564 = vsyncpa [#allocation8], 1
    %s565 = scalar_lea.sflag [#allocation8], 1
    %566 = vsyncpa %s565, 1
    %567 = vsyncpa [#allocation4], 1
    %s568 = scalar_lea.sflag [#allocation4], 1
    %569 = vsyncpa %s568, 1
    %570 = vsyncpa [#allocation5], 1
    %s571 = scalar_lea.sflag [#allocation5], 1
    %572 = vsyncpa %s571, 1

</llo_original>
